<compile_context>
chip_gen: v7x
topology: tpu7x:2x2x1
jax: 0.10.0
libtpu: 0.0.40
codegen_flags: <defaults>
</compile_context>

<pallas_src>
import jax
import jax.numpy as jnp
from jax.experimental import pallas as pl
from jax.experimental.pallas import tpu as pltpu

_LANES = 1024  # lane-dense last dim (multiple of 128)


def _scale_bias_kernel(wb_ref, x_ref, o_ref):
    # wb_ref: (2,) float32 in SMEM -> [conv weight, conv bias]
    # x_ref / o_ref: (TILE_R, _LANES) tile in VMEM
    w = wb_ref[0]
    b = wb_ref[1]
    o_ref[...] = (x_ref[...] * w + b).astype(o_ref.dtype)


def _vmem_capacity_bytes():
    try:
        return int(pltpu.get_tpu_info().vmem_capacity_bytes)
    except Exception:
        # Conservative fallback (v7x-sized VMEM); smaller tiles are always safe.
        return 64 * 1024 * 1024


def dynamic_model_forward(x, weight, bias):
    """Forward pass of DynamicModel.

    x:      (N, 1, H, W) float, NCHW, or None
    weight: (1, 1, 1, 1) float   (Conv2d(1,1,1) weight)
    bias:   (1,)         float   (Conv2d(1,1,1) bias)
    """
    # `if x is not None: x = self.conv(x)` -- the None branch is pure Python glue.
    if x is None:
        return None

    orig_shape = x.shape
    assert orig_shape[1] == 1, "DynamicModel uses Conv2d(1, 1, 1)"

    total = int(x.size)
    elem_bytes = jnp.dtype(x.dtype).itemsize

    # Per-generation tile budget: ~4 live buffers (in/out double-buffered)
    # should stay around 1/4 of physical VMEM.
    vmem_bytes = _vmem_capacity_bytes()
    tile_bytes = vmem_bytes // 16
    tile_r_max = max(8, (tile_bytes // (_LANES * elem_bytes)) // 8 * 8)

    rows = -(-total // _LANES)                       # ceil(total / LANES)
    tile_r = min(tile_r_max, -(-rows // 8) * 8)      # multiple of 8, clipped
    rows_padded = -(-rows // tile_r) * tile_r        # full tiles only
    padded_total = rows_padded * _LANES

    x_flat = x.reshape(-1)
    if padded_total != total:
        x_flat = jnp.pad(x_flat, (0, padded_total - total))
    x2d = x_flat.reshape(rows_padded, _LANES)

    # Pack scalar weight + bias into a single SMEM operand.
    wb = jnp.concatenate([weight.reshape(-1), bias.reshape(-1)]).astype(jnp.float32)

    grid = (rows_padded // tile_r,)
    out2d = pl.pallas_call(
        _scale_bias_kernel,
        out_shape=jax.ShapeDtypeStruct(x2d.shape, x2d.dtype),
        grid=grid,
        in_specs=[
            pl.BlockSpec(memory_space=pltpu.MemorySpace.SMEM),      # packed (w, b)
            pl.BlockSpec((tile_r, _LANES), lambda i: (i, 0)),       # input tile
        ],
        out_specs=pl.BlockSpec((tile_r, _LANES), lambda i: (i, 0)),  # output tile
        compiler_params=pltpu.CompilerParams(
            dimension_semantics=("parallel",),       # shard rows across TCs (v7x)
            vmem_limit_bytes=vmem_bytes // 2,        # headroom above live buffers
        ),
    )(wb, x2d)

    return out2d.reshape(-1)[:total].reshape(orig_shape)


if __name__ == "__main__":
    key = jax.random.PRNGKey(0)
    kx, kw, kb, kx2 = jax.random.split(key, 4)

    # Deterministic synthetic parameters (shapes match nn.Conv2d(1, 1, 1)).
    weight = jax.random.normal(kw, (1, 1, 1, 1), dtype=jnp.float32)
    bias = jax.random.normal(kb, (1,), dtype=jnp.float32)

    # Small shape consistent with Conv2d(1, 1, 1): batch=2, C=1, 16x16 spatial.
    x = jax.random.normal(kx, (2, 1, 16, 16), dtype=jnp.float32)
    out = jax.block_until_ready(dynamic_model_forward(x, weight, bias))
    ref = x * weight[0, 0, 0, 0] + bias[0]
    assert out.shape == x.shape and out.dtype == x.dtype
    assert jnp.allclose(out, ref, atol=1e-6, rtol=1e-6)

    # A second shape whose element count is not a multiple of the lane width,
    # to exercise the pad / slice-back path.
    x2 = jax.random.normal(kx2, (4, 1, 24, 40), dtype=jnp.float32)
    out2 = jax.block_until_ready(dynamic_model_forward(x2, weight, bias))
    ref2 = x2 * weight[0, 0, 0, 0] + bias[0]
    assert out2.shape == x2.shape and out2.dtype == x2.dtype
    assert jnp.allclose(out2, ref2, atol=1e-6, rtol=1e-6)

    # The `x is None` branch of forward().
    assert dynamic_model_forward(None, weight, bias) is None

    print("KERNEL_OK")
</pallas_src>

<mosaic_0001>
module attributes {stable_mosaic.version = 11 : i64} {
  func.func @_scale_bias_kernel(%arg0: i32, %arg1: memref<2xf32, #tpu.memory_space<smem>>, %arg2: memref<8x1024xf32, #tpu.memory_space<vmem>>, %arg3: memref<8x1024xf32, #tpu.memory_space<vmem>>) attributes {dimension_semantics = [#tpu.dimension_semantics<parallel>], iteration_bounds = array<i64: 1>, scalar_prefetch = 0 : i64, scratch_operands = 0 : i64, tpu.core_type = #tpu.core_type<tc>, window_params = [{transform_indices = @transform_0, window_bounds = array<i64: 2>}, {transform_indices = @transform_1, window_bounds = array<i64: 8, 1024>}, {transform_indices = @transform_2, window_bounds = array<i64: 8, 1024>}]} {
    %c0 = arith.constant 0 : index
    %0 = memref.load %arg1[%c0] : memref<2xf32, #tpu.memory_space<smem>>
    %c1 = arith.constant 1 : index
    %1 = memref.load %arg1[%c1] : memref<2xf32, #tpu.memory_space<smem>>
    %c0_0 = arith.constant 0 : index
    %c0_1 = arith.constant 0 : index
    %2 = vector.load %arg2[%c0_0, %c0_1] : memref<8x1024xf32, #tpu.memory_space<vmem>>, vector<8x1024xf32>
    %3 = vector.broadcast %0 : f32 to vector<8x1024xf32>
    %4 = arith.mulf %2, %3 : vector<8x1024xf32>
    %5 = vector.broadcast %1 : f32 to vector<8x1024xf32>
    %6 = arith.addf %4, %5 : vector<8x1024xf32>
    %c0_2 = arith.constant 0 : index
    %c0_3 = arith.constant 0 : index
    %7 = vector.load %arg3[%c0_2, %c0_3] : memref<8x1024xf32, #tpu.memory_space<vmem>>, vector<8x1024xf32>
    tpu.vector_store %arg3[%c0_2, %c0_3], %6 {strides = array<i32>} : memref<8x1024xf32, #tpu.memory_space<vmem>>, vector<8x1024xf32>,
    return
  }
  func.func @transform_0(%arg0: i32) -> i32 {
    %c0_i32 = arith.constant 0 : i32
    %c0_i32_0 = arith.constant 0 : i32
    return %c0_i32 : i32
  }
  func.func @transform_1(%arg0: i32) -> (i32, i32) {
    %c0_i32 = arith.constant 0 : i32
    %c0_i32_0 = arith.constant 0 : i32
    return %arg0, %c0_i32 : i32, i32
  }
  func.func @transform_2(%arg0: i32) -> (i32, i32) {
    %c0_i32 = arith.constant 0 : i32
    %c0_i32_0 = arith.constant 0 : i32
    return %arg0, %c0_i32 : i32, i32
  }
}

</mosaic_0001>

<llo_original>
// kernel: tpu_custom_call.1
$region0: #{tpu_custom_call.1}
  #allocation0 [shape = 'u32[]', space=smem, size = 0x4, offset = 0x4, fixed_abs, tag = 'smem constant byte address 0x4 - core index']
  #allocation1 [shape = 'u32[144,128]{1,0:T(1,128)}', space=vmem, size = 0x12000, scoped, tag = 'internal scratch']
  %s0 = inlined_call_operand.hbm [shape: f32[2], index: 0, kind: input, shape index: {}]
  %s1 = inlined_call_operand.hbm [shape: f32[8,1024], index: 1, kind: input, shape index: {}]
  %s2 = inlined_call_operand.hbm [shape: f32[8,1024], index: 2, kind: output, shape index: {}]
  %s3 = sld [smem:[#allocation0]]
  $region26: #{tpu_custom_call.1} parent=0
    _
  %s5 = ssub.s32 1, %s3
  %s6 = scalar_select 0, %s5, %s3
  $region1: #{tpu_custom_call.1} parent=0
    #allocation2 [shape = 'u8[512]{0}', space=smem, size = 0x200, scoped, tag = 'input window, operand 0, single buffered']
    #allocation3 [shape = 's32[1]{0}', space=sflag, size = 0x4, scoped, tag = 'scoped memory for tpu_custom_call.1']
    #allocation4 [shape = 's32[1]{0}', space=sflag, size = 0x4, scoped, tag = 'scoped memory for tpu_custom_call.1']
    #allocation5 [shape = 's32[1]{0}', space=sflag, size = 0x4, scoped, tag = 'scoped memory for tpu_custom_call.1']
    #allocation6 [shape = 'u8[32768]{0}', space=vmem, size = 0x8000, scoped, tag = 'input window, operand 1, single buffered']
    #allocation7 [shape = 'u8[32768]{0}', space=vmem, size = 0x8000, scoped, tag = 'output window, operand 0, single buffered']
    %7 = vsyncpa [#allocation5], 0
    %8 = vsyncpa [#allocation3], 0
    %9 = vsyncpa [#allocation4], 0
    // Predicated region
    $region2: #{tpu_custom_call.1} parent=1 // pred_check
      _
    $region3: #{tpu_custom_call.1} parent=1 // pred_check_branch
      %11 = sbr.rel (0) target = $region5
    $region4: #{tpu_custom_call.1} parent=1 // pred_region
      %s13 = ssub.s32 16, 16
      %14 = vsyncadd [#allocation5], %s13
      %17 = dma.hbm_to_smem %s0, 16, [#allocation2], [#allocation5]
    $region5: #{tpu_custom_call.1} parent=1 // pred_fallthru
      _
    // Predicated region
    $region6: #{tpu_custom_call.1} parent=1 // pred_check
      _
    $region7: #{tpu_custom_call.1} parent=1 // pred_check_branch
      %19 = sbr.rel (0) target = $region9
    $region8: #{tpu_custom_call.1} parent=1 // pred_region
      %s21 = ssub.s32 1024, 1024
      %22 = vsyncadd [#allocation3], %s21
      %s24 = sshll.u32 [#allocation6], 4
      %s25 = int_to_ptr.vmem [resolvable:$true] %s24
      %27 = dma.hbm_to_vmem [thread:$0]  %s1, 1024, %s25, [#allocation3]
    $region9: #{tpu_custom_call.1} parent=1 // pred_fallthru
      _
    // Predicated region
    $region10: #{tpu_custom_call.1} parent=1 // pred_check
      _
    $region11: #{tpu_custom_call.1} parent=1 // pred_check_branch
      %29 = sbr.rel (0) target = $region13
    $region12: #{tpu_custom_call.1} parent=1 // pred_region
      %30 = dma.done [#allocation5], 16
    $region13: #{tpu_custom_call.1} parent=1 // pred_fallthru
      _
    // Predicated region
    $region14: #{tpu_custom_call.1} parent=1 // pred_check
      _
    $region15: #{tpu_custom_call.1} parent=1 // pred_check_branch
      %32 = sbr.rel (0) target = $region17
    $region16: #{tpu_custom_call.1} parent=1 // pred_region
      %33 = dma.done [#allocation3], 1024
    $region17: #{tpu_custom_call.1} parent=1 // pred_fallthru
      _
    %34 = sfence
    %s35 = sld [smem:[#allocation2]]
    %s36 = sld [smem:[#allocation2 + $0x1]]
    %v37 = vld [vmem:[#allocation6] sm:$0xff]
    %v38 = vld [vmem:[#allocation6 + $0x8] sm:$0xff]
    %v39 = vld [vmem:[#allocation6 + $0x10] sm:$0xff]
    %v40 = vld [vmem:[#allocation6 + $0x18] sm:$0xff]
    %v41 = vld [vmem:[#allocation6 + $0x20] sm:$0xff]
    %v42 = vld [vmem:[#allocation6 + $0x28] sm:$0xff]
    %v43 = vld [vmem:[#allocation6 + $0x30] sm:$0xff]
    %v44 = vld [vmem:[#allocation6 + $0x38] sm:$0xff]
    %v45 = vstv %s35
    %v46 = vmul.f32 %v37, %v45
    %v47 = vmul.f32 %v38, %v45
    %v48 = vmul.f32 %v39, %v45
    %v49 = vmul.f32 %v40, %v45
    %v50 = vmul.f32 %v41, %v45
    %v51 = vmul.f32 %v42, %v45
    %v52 = vmul.f32 %v43, %v45
    %v53 = vmul.f32 %v44, %v45
    %v54 = vstv %s36
    %v55 = vadd.f32 %v46, %v54
    %v56 = vadd.f32 %v47, %v54
    %v57 = vadd.f32 %v48, %v54
    %v58 = vadd.f32 %v49, %v54
    %v59 = vadd.f32 %v50, %v54
    %v60 = vadd.f32 %v51, %v54
    %v61 = vadd.f32 %v52, %v54
    %v62 = vadd.f32 %v53, %v54
    %63 = vst [vmem:[#allocation7] sm:$0xff] %v55
    %64 = vst [vmem:[#allocation7 + $0x8] sm:$0xff] %v56
    %65 = vst [vmem:[#allocation7 + $0x10] sm:$0xff] %v57
    %66 = vst [vmem:[#allocation7 + $0x18] sm:$0xff] %v58
    %67 = vst [vmem:[#allocation7 + $0x20] sm:$0xff] %v59
    %68 = vst [vmem:[#allocation7 + $0x28] sm:$0xff] %v60
    %69 = vst [vmem:[#allocation7 + $0x30] sm:$0xff] %v61
    %70 = vst [vmem:[#allocation7 + $0x38] sm:$0xff] %v62
    // Predicated region
    $region18: #{tpu_custom_call.1} parent=1 // pred_check
      _
    $region19: #{tpu_custom_call.1} parent=1 // pred_check_branch
      %72 = sbr.rel (0) target = $region21
    $region20: #{tpu_custom_call.1} parent=1 // pred_region
      %s74 = ssub.s32 1024, 1024
      %75 = vsyncadd [#allocation4], %s74
      %s77 = sshll.u32 [#allocation7], 4
      %s78 = int_to_ptr.vmem [resolvable:$true] %s77
      %80 = dma.vmem_to_hbm [thread:$0]  %s78, 1024, %s2, [#allocation4]
    $region21: #{tpu_custom_call.1} parent=1 // pred_fallthru
      _
    // Predicated region
    $region22: #{tpu_custom_call.1} parent=1 // pred_check
      _
    $region23: #{tpu_custom_call.1} parent=1 // pred_check_branch
      %82 = sbr.rel (0) target = $region25
    $region24: #{tpu_custom_call.1} parent=1 // pred_region
      %83 = dma.done [#allocation4], 1024
    $region25: #{tpu_custom_call.1} parent=1 // pred_fallthru
      _
    %84 = vsyncpa [#allocation3], 1
    %85 = vsyncpa [#allocation4], 1
    %86 = vsyncpa [#allocation5], 1

</llo_original>
